<compile_context>
chip_gen: v5e
topology: v5e:2x2
jax: 0.10.0
libtpu: 0.0.40
codegen_flags: <defaults>
</compile_context>

<pallas_src>
import jax
import jax.numpy as jnp
from jax.experimental import pallas as pl
from jax.experimental.pallas import tpu as pltpu


def _round_up(n, m):
    return ((n + m - 1) // m) * m


def _vmem_capacity_bytes():
    """Physical VMEM per TensorCore (128 MiB v5e/v6e, 64 MiB v7x); safe fallback."""
    try:
        cap = getattr(pltpu.get_tpu_info(), "vmem_capacity_bytes", None)
        if cap:
            return int(cap)
    except Exception:
        pass
    return 64 * 1024 * 1024


# --------------------------------------------------------------------------- #
# Kernels
# --------------------------------------------------------------------------- #
def ffn_kernel_resident(x_ref, w1_ref, b1_ref, w2_ref, b2_ref, o_ref):
    """Weights-resident fast path. grid = (row tiles,). W1/W2/b1/b2 have constant
    index_maps, so they are DMA'd once and stay in VMEM across all row tiles."""
    h = jnp.dot(x_ref[...], w1_ref[...], preferred_element_type=jnp.float32)
    h = jnp.maximum(h + b1_ref[...], 0.0)
    # TODO(synk): dropout (p=0.1) is identity in eval mode; training-mode mask not emitted.
    y = jnp.dot(h.astype(w2_ref.dtype), w2_ref[...],
                preferred_element_type=jnp.float32)
    o_ref[...] = (y + b2_ref[...]).astype(o_ref.dtype)


def ffn_kernel_stream(x_ref, w1_ref, b1_ref, w2_ref, b2_ref, o_ref, acc_ref):
    """Weight-streaming fallback. grid = (row tiles, ff tiles). One step adds a
    single F-slice's contribution to the resident f32 accumulator."""
    f = pl.program_id(1)

    @pl.when(f == 0)
    def _():
        acc_ref[...] = jnp.zeros_like(acc_ref)

    h = jnp.dot(x_ref[...], w1_ref[...], preferred_element_type=jnp.float32)
    h = jnp.maximum(h + b1_ref[...], 0.0)
    # TODO(synk): dropout (p=0.1) is identity in eval mode; training-mode mask not emitted.
    acc_ref[...] += jnp.dot(h.astype(w2_ref.dtype), w2_ref[...],
                            preferred_element_type=jnp.float32)

    @pl.when(f == pl.num_programs(1) - 1)
    def _():
        o_ref[...] = (acc_ref[...] + b2_ref[...]).astype(o_ref.dtype)


# --------------------------------------------------------------------------- #
# Wrapper
# --------------------------------------------------------------------------- #
def make_ffn_params(w1, b1, w2, b2, *, hp_mult=256, fp_mult=512):
    """Pad + cast FFN parameters once (call-invariant; hoisted out of the per-call
    path). Weights are stored [in, out] (transposed vs. PyTorch nn.Linear).
    Hp is a multiple of 256 to fill the 256x256 MXU on v6e/v7x; Fp is a multiple
    of 512 so every streaming tf candidate (128/256/512) divides it."""
    H, F = w1.shape
    assert b1.shape == (F,) and w2.shape == (F, H) and b2.shape == (H,)
    Hp = _round_up(H, hp_mult)
    Fp = _round_up(F, fp_mult)
    return dict(
        H=H, F=F, Hp=Hp, Fp=Fp,
        w1=jnp.pad(w1.astype(jnp.bfloat16), ((0, Hp - H), (0, Fp - F))),
        b1=jnp.pad(b1.astype(jnp.float32), (0, Fp - F)).reshape(1, Fp),
        w2=jnp.pad(w2.astype(jnp.bfloat16), ((0, Fp - F), (0, Hp - H))),
        b2=jnp.pad(b2.astype(jnp.float32), (0, Hp - H)).reshape(1, Hp),
    )


def ffn_forward(x, params, *, tm=512, tf=512, force_streaming=False):
    """relu(x @ w1 + b1) @ w2 + b2   (dropout = identity, eval mode).

    x: [B, S, H]; params from make_ffn_params(). Output matches x.dtype.
    """
    B, S, H = x.shape
    assert H == params["H"]
    Hp, Fp = params["Hp"], params["Fp"]
    M = B * S
    out_dtype = x.dtype
    out_isz = jnp.dtype(out_dtype).itemsize

    cap = _vmem_capacity_bytes()
    budget = int(cap * 0.85)  # headroom for compiler-internal scratch

    # ---- row tile: multiple of 16 (bf16 packs 2 rows per sublane) ------------
    tm = max(16, _round_up(min(tm, _round_up(M, 16)), 16))
    # Guarantee >= 2 row tiles when there are enough rows, so the megacore
    # "parallel" axis keeps both v7x TensorCores busy (cheap elsewhere).
    if _round_up(M, 16) <= tm and M >= 32:
        tm = _round_up((M + 1) // 2, 16)

    # ---- VMEM budgets (now include the matmul-1 intermediate h) --------------
    def needed_resident(tm_):
        return (2 * tm_ * Hp * 2                    # x tiles (bf16, double-buffered)
                + 2 * (Hp * Fp * 2 + Fp * Hp * 2)   # W1 + W2 (conservatively 2 bufs)
                + 2 * (Fp * 4 + Hp * 4)             # biases (f32)
                + 2 * tm_ * Hp * out_isz            # output tiles
                + tm_ * Fp * 6)                     # h in f32 + bf16 copy

    def needed_stream(tm_, tf_):
        return (2 * tm_ * Hp * 2                    # x tiles
                + 2 * Hp * tf_ * 2 + 2 * tf_ * 4    # W1 F-slices + b1
                + 2 * tf_ * Hp * 2 + 2 * Hp * 4     # W2 F-slices + b2
                + 2 * tm_ * Hp * out_isz            # output tiles
                + tm_ * Hp * 4                      # f32 accumulator scratch
                + tm_ * tf_ * 6)                    # h in f32 + bf16 copy

    tm_candidates = []
    t = tm
    while True:
        tm_candidates.append(t)
        if t <= 16:
            break
        t = max(16, _round_up(t // 2, 16))

    path, tf_eff, needed = None, Fp, 0
    if not force_streaming:
        for tm_try in tm_candidates:
            if needed_resident(tm_try) <= budget:
                path, tm, needed = "resident", tm_try, needed_resident(tm_try)
                break
    if path is None:
        tf_cands, seen = [], set()
        for c in (_round_up(min(tf, Fp), 128), 512, 256, 128):
            if 0 < c <= Fp and Fp % c == 0 and c not in seen:
                seen.add(c)
                tf_cands.append(c)
        for tm_try in tm_candidates:
            for tf_try in tf_cands:
                if needed_stream(tm_try, tf_try) <= budget:
                    path, tm, tf_eff = "stream", tm_try, tf_try
                    needed = needed_stream(tm_try, tf_try)
                    break
            if path is not None:
                break
        if path is None:  # last resort: smallest tiles, let the compiler try
            path, tm, tf_eff = "stream", 16, tf_cands[-1]
            needed = needed_stream(tm, tf_eff)

    Mp = _round_up(M, tm)
    n_m = Mp // tm

    # Single-pass pad + cast of activations (bf16 before padding).
    x_b = jnp.pad(x.reshape(M, H).astype(jnp.bfloat16),
                  ((0, Mp - M), (0, Hp - H)))

    vmem_limit = int(min(budget, max(needed + needed // 4, 32 * 1024 * 1024)))

    # Cost estimate accounts for the n_m-fold weight re-read in the streaming path.
    weight_reads = (1 if path == "resident" else n_m) * (Hp * Fp * 2 + Fp * Hp * 2)
    cost = pl.CostEstimate(
        flops=4 * Mp * Hp * Fp,
        transcendentals=0,
        bytes_accessed=int(Mp * Hp * 2 + weight_reads + Fp * 4 + Hp * 4
                           + Mp * Hp * out_isz),
    )

    if path == "resident":
        grid_spec = pltpu.PrefetchScalarGridSpec(
            num_scalar_prefetch=0,
            grid=(n_m,),
            in_specs=[
                pl.BlockSpec((tm, Hp), lambda i: (i, 0)),    # x row tile
                pl.BlockSpec((Hp, Fp), lambda i: (0, 0)),    # W1 resident (single DMA)
                pl.BlockSpec((1, Fp), lambda i: (0, 0)),     # b1 resident
                pl.BlockSpec((Fp, Hp), lambda i: (0, 0)),    # W2 resident (single DMA)
                pl.BlockSpec((1, Hp), lambda i: (0, 0)),     # b2 resident
            ],
            out_specs=pl.BlockSpec((tm, Hp), lambda i: (i, 0)),
        )
        kernel = ffn_kernel_resident
        dim_sem = ("parallel",)
    else:
        n_f = Fp // tf_eff
        grid_spec = pltpu.PrefetchScalarGridSpec(
            num_scalar_prefetch=0,
            grid=(n_m, n_f),
            in_specs=[
                pl.BlockSpec((tm, Hp), lambda i, f: (i, 0)),      # x tile (not re-DMA'd over f)
                pl.BlockSpec((Hp, tf_eff), lambda i, f: (0, f)),  # W1 F-slice
                pl.BlockSpec((1, tf_eff), lambda i, f: (0, f)),   # b1 F-slice
                pl.BlockSpec((tf_eff, Hp), lambda i, f: (f, 0)),  # W2 F-slice
                pl.BlockSpec((1, Hp), lambda i, f: (0, 0)),       # b2 resident
            ],
            out_specs=pl.BlockSpec((tm, Hp), lambda i, f: (i, 0)),
            scratch_shapes=[pltpu.VMEM((tm, Hp), jnp.float32)],
        )
        kernel = ffn_kernel_stream
        dim_sem = ("parallel", "arbitrary")

    out = pl.pallas_call(
        kernel,
        out_shape=jax.ShapeDtypeStruct((Mp, Hp), out_dtype),
        grid_spec=grid_spec,
        compiler_params=pltpu.CompilerParams(
            dimension_semantics=dim_sem,
            vmem_limit_bytes=vmem_limit,
        ),
        cost_estimate=cost,
    )(x_b, params["w1"], params["b1"], params["w2"], params["b2"])

    return out[:M, :H].reshape(B, S, H)


if __name__ == "__main__":
    # Small shapes, deliberately NOT 128-aligned (exercises padding + both paths):
    # hidden -> ff -> hidden with H=96, F=320; M = B*S = 46 (non-multiple of 16).
    B, S, H, F = 2, 23, 96, 320

    key = jax.random.PRNGKey(0)
    kx, kw1, kb1, kw2, kb2 = jax.random.split(key, 5)

    x = jax.random.normal(kx, (B, S, H), dtype=jnp.float32)
    # Deterministic parameter init (uniform, same spirit as nn.Linear defaults).
    w1 = jax.random.uniform(kw1, (H, F), jnp.float32, -1.0 / H**0.5, 1.0 / H**0.5)
    b1 = jax.random.uniform(kb1, (F,), jnp.float32, -1.0 / H**0.5, 1.0 / H**0.5)
    w2 = jax.random.uniform(kw2, (F, H), jnp.float32, -1.0 / F**0.5, 1.0 / F**0.5)
    b2 = jax.random.uniform(kb2, (H,), jnp.float32, -1.0 / F**0.5, 1.0 / F**0.5)

    # Pad + cast the weights once (call-invariant; hoisted out of the hot path).
    params = make_ffn_params(w1, b1, w2, b2)

    # Default: weights-resident fast path (weights easily fit VMEM here).
    out = jax.block_until_ready(ffn_forward(x, params))
    # Fallback: weight-streaming path with small tiles (multi-step F accumulation).
    out_stream = jax.block_until_ready(
        ffn_forward(x, params, tm=16, tf=128, force_streaming=True))

    # Mixed-precision reference (same bf16-in / f32-accumulate recipe as kernel).
    xb = x.reshape(-1, H).astype(jnp.bfloat16)
    h = jnp.dot(xb, w1.astype(jnp.bfloat16), preferred_element_type=jnp.float32) + b1
    h = jnp.maximum(h, 0.0)
    ref_mp = (jnp.dot(h.astype(jnp.bfloat16), w2.astype(jnp.bfloat16),
                      preferred_element_type=jnp.float32) + b2).reshape(B, S, H)
    # Full-f32 reference (module semantics, dropout = identity in eval mode).
    ref_f32 = (jnp.maximum(x.reshape(-1, H) @ w1 + b1, 0.0) @ w2 + b2).reshape(B, S, H)

    assert jnp.allclose(out, ref_mp, atol=2e-3, rtol=2e-3), \
        "resident path mismatch vs mixed-precision ref"
    assert jnp.allclose(out_stream, ref_mp, atol=2e-3, rtol=2e-3), \
        "streaming path mismatch vs mixed-precision ref"
    assert jnp.allclose(out, ref_f32, atol=5e-2, rtol=5e-2), \
        "mismatch vs f32 reference"

    print("KERNEL_OK")
</pallas_src>

<mosaic_0001>
module attributes {stable_mosaic.version = 11 : i64} {
  func.func @ffn_kernel_resident(%arg0: i32, %arg1: memref<32x256xbf16, #tpu.memory_space<vmem>>, %arg2: memref<256x512xbf16, #tpu.memory_space<vmem>>, %arg3: memref<1x512xf32, #tpu.memory_space<vmem>>, %arg4: memref<512x256xbf16, #tpu.memory_space<vmem>>, %arg5: memref<1x256xf32, #tpu.memory_space<vmem>>, %arg6: memref<32x256xf32, #tpu.memory_space<vmem>>) attributes {dimension_semantics = [#tpu.dimension_semantics<parallel>], iteration_bounds = array<i64: 2>, scalar_prefetch = 0 : i64, scratch_operands = 0 : i64, tpu.core_type = #tpu.core_type<tc>, window_params = [{transform_indices = @transform_0, window_bounds = array<i64: 32, 256>}, {pipeline_mode = #tpu.pipeline_mode<synchronous>, transform_indices = @transform_1, window_bounds = array<i64: 256, 512>}, {pipeline_mode = #tpu.pipeline_mode<synchronous>, transform_indices = @transform_2, window_bounds = array<i64: 1, 512>}, {pipeline_mode = #tpu.pipeline_mode<synchronous>, transform_indices = @transform_3, window_bounds = array<i64: 512, 256>}, {pipeline_mode = #tpu.pipeline_mode<synchronous>, transform_indices = @transform_4, window_bounds = array<i64: 1, 256>}, {transform_indices = @transform_5, window_bounds = array<i64: 32, 256>}]} {
    %c0 = arith.constant 0 : index
    %c0_0 = arith.constant 0 : index
    %0 = vector.load %arg1[%c0, %c0_0] : memref<32x256xbf16, #tpu.memory_space<vmem>>, vector<32x256xbf16>
    %c0_1 = arith.constant 0 : index
    %c0_2 = arith.constant 0 : index
    %1 = vector.load %arg2[%c0_1, %c0_2] : memref<256x512xbf16, #tpu.memory_space<vmem>>, vector<256x512xbf16>
    %cst = arith.constant dense<0.000000e+00> : vector<32x512xf32>
    %2 = tpu.matmul %0, %1, %cst {dimension_numbers = #tpu.dot_dimension_numbers<[1], [0], [0], [1], [0, 0, 1, 1], [], []>} : vector<32x256xbf16>, vector<256x512xbf16>, vector<32x512xf32> -> vector<32x512xf32>
    %c0_3 = arith.constant 0 : index
    %c0_4 = arith.constant 0 : index
    %3 = vector.load %arg3[%c0_3, %c0_4] : memref<1x512xf32, #tpu.memory_space<vmem>>, vector<1x512xf32>
    %4 = vector.broadcast %3 : vector<1x512xf32> to vector<32x512xf32>
    %5 = arith.addf %2, %4 : vector<32x512xf32>
    %cst_5 = arith.constant 0.000000e+00 : f32
    %6 = vector.broadcast %cst_5 : f32 to vector<32x512xf32>
    %7 = arith.maximumf %5, %6 : vector<32x512xf32>
    %8 = arith.truncf %7 : vector<32x512xf32> to vector<32x512xbf16>
    %c0_6 = arith.constant 0 : index
    %c0_7 = arith.constant 0 : index
    %9 = vector.load %arg4[%c0_6, %c0_7] : memref<512x256xbf16, #tpu.memory_space<vmem>>, vector<512x256xbf16>
    %cst_8 = arith.constant dense<0.000000e+00> : vector<32x256xf32>
    %10 = tpu.matmul %8, %9, %cst_8 {dimension_numbers = #tpu.dot_dimension_numbers<[1], [0], [0], [1], [0, 0, 1, 1], [], []>} : vector<32x512xbf16>, vector<512x256xbf16>, vector<32x256xf32> -> vector<32x256xf32>
    %c0_9 = arith.constant 0 : index
    %c0_10 = arith.constant 0 : index
    %11 = vector.load %arg5[%c0_9, %c0_10] : memref<1x256xf32, #tpu.memory_space<vmem>>, vector<1x256xf32>
    %12 = vector.broadcast %11 : vector<1x256xf32> to vector<32x256xf32>
    %13 = arith.addf %10, %12 : vector<32x256xf32>
    %c0_11 = arith.constant 0 : index
    %c0_12 = arith.constant 0 : index
    %14 = vector.load %arg6[%c0_11, %c0_12] : memref<32x256xf32, #tpu.memory_space<vmem>>, vector<32x256xf32>
    tpu.vector_store %arg6[%c0_11, %c0_12], %13 {strides = array<i32>} : memref<32x256xf32, #tpu.memory_space<vmem>>, vector<32x256xf32>,
    return
  }
  func.func @transform_0(%arg0: i32) -> (i32, i32) {
    %c0_i32 = arith.constant 0 : i32
    %c0_i32_0 = arith.constant 0 : i32
    return %arg0, %c0_i32 : i32, i32
  }
  func.func @transform_1(%arg0: i32) -> (i32, i32) {
    %c0_i32 = arith.constant 0 : i32
    %c0_i32_0 = arith.constant 0 : i32
    %c0_i32_1 = arith.constant 0 : i32
    return %c0_i32, %c0_i32_0 : i32, i32
  }
  func.func @transform_2(%arg0: i32) -> (i32, i32) {
    %c0_i32 = arith.constant 0 : i32
    %c0_i32_0 = arith.constant 0 : i32
    %c0_i32_1 = arith.constant 0 : i32
    return %c0_i32, %c0_i32_0 : i32, i32
  }
  func.func @transform_3(%arg0: i32) -> (i32, i32) {
    %c0_i32 = arith.constant 0 : i32
    %c0_i32_0 = arith.constant 0 : i32
    %c0_i32_1 = arith.constant 0 : i32
    return %c0_i32, %c0_i32_0 : i32, i32
  }
  func.func @transform_4(%arg0: i32) -> (i32, i32) {
    %c0_i32 = arith.constant 0 : i32
    %c0_i32_0 = arith.constant 0 : i32
    %c0_i32_1 = arith.constant 0 : i32
    return %c0_i32, %c0_i32_0 : i32, i32
  }
  func.func @transform_5(%arg0: i32) -> (i32, i32) {
    %c0_i32 = arith.constant 0 : i32
    %c0_i32_0 = arith.constant 0 : i32
    return %arg0, %c0_i32 : i32, i32
  }
}

</mosaic_0001>

<llo_original>
// kernel: tpu_custom_call.1
$region0: #{tpu_custom_call.1}
  #allocation0 [shape = 'u32[]', space=smem, size = 0x4, offset = 0x4, fixed_abs, tag = 'smem constant byte address 0x4 - core index']
  #allocation1 [shape = 'u32[72,128]{1,0:T(1,128)}', space=vmem, size = 0x9000, scoped, tag = 'internal scratch']
  %s0 = inlined_call_operand.hbm [shape: bf16[64,256], index: 0, kind: input, shape index: {}]
  %s1 = inlined_call_operand.hbm [shape: bf16[256,512], index: 1, kind: input, shape index: {}]
  %s2 = inlined_call_operand.hbm [shape: f32[1,512], index: 2, kind: input, shape index: {}]
  %s3 = inlined_call_operand.hbm [shape: bf16[512,256], index: 3, kind: input, shape index: {}]
  %s4 = inlined_call_operand.vmem [shape: f32[1,256], index: 4, kind: input, shape index: {}]
  %s5 = inlined_call_operand.hbm [shape: f32[64,256], index: 5, kind: output, shape index: {}]
  %s6 = sld [smem:[#allocation0]]
  $region69: #{tpu_custom_call.1} parent=0
    _
  %s8 = ssub.s32 1, %s6
  %s9 = scalar_select 0, %s8, %s6
  $region1: #{tpu_custom_call.1} parent=0
    #allocation2 [shape = 'u8[32768]{0}', space=vmem, size = 0x8000, scoped, tag = 'input window, operand 0']
    #allocation3 [shape = 's32[2]{0}', space=sflag, size = 0x8, scoped, tag = 'scoped memory for tpu_custom_call.1']
    #allocation4 [shape = 's32[2]{0}', space=sflag, size = 0x8, scoped, tag = 'scoped memory for tpu_custom_call.1']
    #allocation5 [shape = 'u8[262144]{0}', space=vmem, size = 0x40000, scoped, tag = 'input window, operand 1, single buffered']
    #allocation6 [shape = 's32[1]{0}', space=sflag, size = 0x4, scoped, tag = 'scoped memory for tpu_custom_call.1']
    #allocation7 [shape = 'u8[2048]{0}', space=vmem, size = 0x800, scoped, tag = 'input window, operand 2, single buffered']
    #allocation8 [shape = 'u8[262144]{0}', space=vmem, size = 0x40000, scoped, tag = 'input window, operand 3, single buffered']
    #allocation9 [shape = 's32[1]{0}', space=sflag, size = 0x4, scoped, tag = 'scoped memory for tpu_custom_call.1']
    #allocation10 [shape = 'u8[65536]{0}', space=vmem, size = 0x10000, scoped, tag = 'output window, operand 0']
    %10 = vsyncpa [#allocation3], 0
    %s11 = scalar_lea.sflag [#allocation3], 1
    %12 = vsyncpa %s11, 0
    %13 = vsyncpa [#allocation6], 0
    %14 = vsyncpa [#allocation9], 0
    %15 = vsyncpa [#allocation4], 0
    %s16 = scalar_lea.sflag [#allocation4], 1
    %17 = vsyncpa %s16, 0
    loop: start=0, step=1, limit=4
    $region2: #{tpu_custom_call.1} parent=1 // loop_pre_header
      _
    $region3: #{tpu_custom_call.1} parent=1 // loop_header
      %s19 = sphi 0, %s23
      %p20 = scmp.ge.s32.totalorder %s19, 4
      %s29 = sphi 0, %s31
      %s32 = sphi 0, %s29
      %s33 = sphi 0, %s32
      %s49 = sphi 0, %s33
      %s53 = sphi 0, %s53
      %s55 = sphi 0, %s53
      %s56 = sphi 0, %s55
      %s70 = sphi 0, %s56
      %s74 = sphi 0, %s74
      %s76 = sphi 0, %s74
      %s77 = sphi 0, %s76
      %s91 = sphi 0, %s77
      %s95 = sphi 0, %s95
      %s97 = sphi 0, %s95
      %s98 = sphi 0, %s97
      %s112 = sphi 0, %s98
      %s116 = sphi 0, %s116
      %s118 = sphi 0, %s116
      %s119 = sphi 0, %s118
      %s133 = sphi 0, %s119
      %s139 = sphi 0, %s141
      %s142 = sphi 0, %s139
      %s143 = sphi 0, %s142
      %s159 = sphi 0, %s143
    $region4: #{tpu_custom_call.1} parent=1 // loop_header_branch
      %22 = sbr.rel (%p20) target = $region8
    $region5: #{tpu_custom_call.1} parent=1 // loop_body
      %s24 = ssub.s32 %s19, 1
      %s25 = ssub.s32 %s19, 2
      %s26 = sadd.s32 %s19, 1
      %s27 = ssub.s32 %s19, %s26
      %p28 = scmp.eq.s32.totalorder %s27, 0
      %s30 = sadd.s32 %s29, 1
      %s31 = scalar_select %p28, %s29, %s30
      %p34 = pneg %p28
      %p35 = scmp.eq.s32.totalorder %s19, 1
      %p36 = por %p34, %p35
      %p37 = scmp.ne.s32.totalorder %s29, %s32
      %p38 = scmp.eq.s32.totalorder %s19, 0
      %p39 = por %p37, %p38
      %p40 = scmp.ne.s32.totalorder %s29, %s32
      %p41 = scmp.eq.s32.totalorder %s24, 1
      %p42 = por %p40, %p41
      %p43 = scmp.ne.s32.totalorder %s32, %s33
      %p44 = scmp.eq.s32.totalorder %s24, 0
      %p45 = por %p43, %p44
      %p46 = scmp.ne.s32.totalorder %s32, %s33
      %p47 = scmp.eq.s32.totalorder %s25, 1
      %p48 = por %p46, %p47
      %p50 = scmp.ne.s32.totalorder %s33, %s49
      %p51 = scmp.eq.s32.totalorder %s25, 0
      %p52 = por %p50, %p51
      %s54 = sadd.s32 %s53, 1
      %p57 = scmp.eq.s32.totalorder %s19, 1
      %p58 = scmp.ne.s32.totalorder %s53, %s55
      %p59 = scmp.eq.s32.totalorder %s19, 0
      %p60 = por %p58, %p59
      %p61 = scmp.ne.s32.totalorder %s53, %s55
      %p62 = scmp.eq.s32.totalorder %s24, 1
      %p63 = por %p61, %p62
      %p64 = scmp.ne.s32.totalorder %s55, %s56
      %p65 = scmp.eq.s32.totalorder %s24, 0
      %p66 = por %p64, %p65
      %p67 = scmp.ne.s32.totalorder %s55, %s56
      %p68 = scmp.eq.s32.totalorder %s25, 1
      %p69 = por %p67, %p68
      %p71 = scmp.ne.s32.totalorder %s56, %s70
      %p72 = scmp.eq.s32.totalorder %s25, 0
      %p73 = por %p71, %p72
      %s75 = sadd.s32 %s74, 1
      %p78 = scmp.eq.s32.totalorder %s19, 1
      %p79 = scmp.ne.s32.totalorder %s74, %s76
      %p80 = scmp.eq.s32.totalorder %s19, 0
      %p81 = por %p79, %p80
      %p82 = scmp.ne.s32.totalorder %s74, %s76
      %p83 = scmp.eq.s32.totalorder %s24, 1
      %p84 = por %p82, %p83
      %p85 = scmp.ne.s32.totalorder %s76, %s77
      %p86 = scmp.eq.s32.totalorder %s24, 0
      %p87 = por %p85, %p86
      %p88 = scmp.ne.s32.totalorder %s76, %s77
      %p89 = scmp.eq.s32.totalorder %s25, 1
      %p90 = por %p88, %p89
      %p92 = scmp.ne.s32.totalorder %s77, %s91
      %p93 = scmp.eq.s32.totalorder %s25, 0
      %p94 = por %p92, %p93
      %s96 = sadd.s32 %s95, 1
      %p99 = scmp.eq.s32.totalorder %s19, 1
      %p100 = scmp.ne.s32.totalorder %s95, %s97
      %p101 = scmp.eq.s32.totalorder %s19, 0
      %p102 = por %p100, %p101
      %p103 = scmp.ne.s32.totalorder %s95, %s97
      %p104 = scmp.eq.s32.totalorder %s24, 1
      %p105 = por %p103, %p104
      %p106 = scmp.ne.s32.totalorder %s97, %s98
      %p107 = scmp.eq.s32.totalorder %s24, 0
      %p108 = por %p106, %p107
      %p109 = scmp.ne.s32.totalorder %s97, %s98
      %p110 = scmp.eq.s32.totalorder %s25, 1
      %p111 = por %p109, %p110
      %p113 = scmp.ne.s32.totalorder %s98, %s112
      %p114 = scmp.eq.s32.totalorder %s25, 0
      %p115 = por %p113, %p114
      %s117 = sadd.s32 %s116, 1
      %p120 = scmp.eq.s32.totalorder %s19, 1
      %p121 = scmp.ne.s32.totalorder %s116, %s118
      %p122 = scmp.eq.s32.totalorder %s19, 0
      %p123 = por %p121, %p122
      %p124 = scmp.ne.s32.totalorder %s116, %s118
      %p125 = scmp.eq.s32.totalorder %s24, 1
      %p126 = por %p124, %p125
      %p127 = scmp.ne.s32.totalorder %s118, %s119
      %p128 = scmp.eq.s32.totalorder %s24, 0
      %p129 = por %p127, %p128
      %p130 = scmp.ne.s32.totalorder %s118, %s119
      %p131 = scmp.eq.s32.totalorder %s25, 1
      %p132 = por %p130, %p131
      %p134 = scmp.ne.s32.totalorder %s119, %s133
      %p135 = scmp.eq.s32.totalorder %s25, 0
      %p136 = por %p134, %p135
      %s137 = ssub.s32 %s19, %s26
      %p138 = scmp.eq.s32.totalorder %s137, 0
      %s140 = sadd.s32 %s139, 1
      %s141 = scalar_select %p138, %s139, %s140
      %p144 = pneg %p138
      %p145 = scmp.eq.s32.totalorder %s19, 1
      %p146 = por %p144, %p145
      %p147 = scmp.ne.s32.totalorder %s139, %s142
      %p148 = scmp.eq.s32.totalorder %s19, 0
      %p149 = por %p147, %p148
      %p150 = scmp.ne.s32.totalorder %s139, %s142
      %p151 = scmp.eq.s32.totalorder %s24, 1
      %p152 = por %p150, %p151
      %p153 = scmp.ne.s32.totalorder %s142, %s143
      %p154 = scmp.eq.s32.totalorder %s24, 0
      %p155 = por %p153, %p154
      %p156 = scmp.ne.s32.totalorder %s142, %s143
      %p157 = scmp.eq.s32.totalorder %s25, 1
      %p158 = por %p156, %p157
      %p160 = scmp.ne.s32.totalorder %s143, %s159
      %p161 = scmp.eq.s32.totalorder %s25, 0
      %p162 = por %p160, %p161
      %p163 = scmp.le.s32.totalorder 1, %s19
      %p164 = scmp.lt.s32.totalorder %s19, 3
      %p165 = pnand %p163, %p164
      %p166 = pneg %p165
      // Predicated region
      $region9: #{tpu_custom_call.1} parent=5 // pred_check
        _
      $region10: #{tpu_custom_call.1} parent=5 // pred_check_branch
        %168 = sbr.rel (%p165) target = $region12
      $region11: #{tpu_custom_call.1} parent=5 // pred_region
        %s169 = ssub.s32 %s19, 1
        // Predicated region
        $region13: #{tpu_custom_call.1} parent=11 // pred_check
          %p170 = pneg %p66
        $region14: #{tpu_custom_call.1} parent=11 // pred_check_branch
          %172 = sbr.rel (%p170) target = $region16
        $region15: #{tpu_custom_call.1} parent=11 // pred_region
          %174 = vsyncadd [#allocation6], 0
          %s175 = sshll.u32 %s1, 4
          %s176 = int_to_ptr.hbm [resolvable:$true] %s175
          %s177 = sshll.u32 [#allocation5], 4
          %s178 = int_to_ptr.vmem [resolvable:$true] %s177
          %183 = dma.hbm_to_vmem [thread:$0]  %s176, 8192, %s178, [#allocation6], 256, 256, 16
        $region16: #{tpu_custom_call.1} parent=11 // pred_fallthru
          _
        // Predicated region
        $region17: #{tpu_custom_call.1} parent=11 // pred_check
          %p184 = pneg %p87
        $region18: #{tpu_custom_call.1} parent=11 // pred_check_branch
          %186 = sbr.rel (%p184) target = $region20
        $region19: #{tpu_custom_call.1} parent=11 // pred_region
          %188 = vsyncadd [#allocation6], 0
          %s190 = sshll.u32 %s2, 4
          %s191 = int_to_ptr.hbm [resolvable:$true] %s190
          %s192 = sshll.u32 [#allocation7], 4
          %s193 = int_to_ptr.vmem [resolvable:$true] %s192
          %195 = dma.hbm_to_vmem [thread:$0]  %s191, 64, %s193, [#allocation6]
        $region20: #{tpu_custom_call.1} parent=11 // pred_fallthru
          _
        // Predicated region
        $region21: #{tpu_custom_call.1} parent=11 // pred_check
          %p196 = pneg %p108
        $region22: #{tpu_custom_call.1} parent=11 // pred_check_branch
          %198 = sbr.rel (%p196) target = $region24
        $region23: #{tpu_custom_call.1} parent=11 // pred_region
          %200 = vsyncadd [#allocation9], 0
          %s201 = sshll.u32 %s3, 4
          %s202 = int_to_ptr.hbm [resolvable:$true] %s201
          %s203 = sshll.u32 [#allocation8], 4
          %s204 = int_to_ptr.vmem [resolvable:$true] %s203
          %209 = dma.hbm_to_vmem [thread:$0]  %s202, 8192, %s204, [#allocation9], 128, 128, 8
        $region24: #{tpu_custom_call.1} parent=11 // pred_fallthru
          _
        // Predicated region
        $region25: #{tpu_custom_call.1} parent=11 // pred_check
          %p210 = pneg %p129
        $region26: #{tpu_custom_call.1} parent=11 // pred_check_branch
          %212 = sbr.rel (%p210) target = $region28
        $region27: #{tpu_custom_call.1} parent=11 // pred_region
          _
        $region28: #{tpu_custom_call.1} parent=11 // pred_fallthru
          _
      $region12: #{tpu_custom_call.1} parent=5 // pred_fallthru
        _
      %p213 = scmp.lt.s32.totalorder %s19, 2
      // Predicated region
      $region29: #{tpu_custom_call.1} parent=5 // pred_check
        %p214 = pneg %p213
      $region30: #{tpu_custom_call.1} parent=5 // pred_check_branch
        %216 = sbr.rel (%p214) target = $region32
      $region31: #{tpu_custom_call.1} parent=5 // pred_region
        // Predicated region
        $region33: #{tpu_custom_call.1} parent=31 // pred_check
          %p217 = pneg %p39
        $region34: #{tpu_custom_call.1} parent=31 // pred_check_branch
          %219 = sbr.rel (%p217) target = $region36
        $region35: #{tpu_custom_call.1} parent=31 // pred_region
          %s220 = sand.u32 %s29, 1
          %s221 = scalar_lea.sflag [#allocation3], %s220
          %s222 = sand.u32 %s29, 1
          %s223 = smul.addr %s222, 32
          %s224 = scalar_lea.vmem [#allocation2], %s223
          %s225 = smul.u32 4, %s19
          %227 = vsyncadd %s221, 0
          %s228 = smul.addr %s225, 2
          %s229 = smul.addr %s228, 4
          %s230 = scalar_lea.hbm %s0, %s229
          %s231 = sshll.u32 %s230, 4
          %s232 = int_to_ptr.hbm [resolvable:$true] %s231
          %s233 = sshll.u32 %s224, 4
          %s234 = int_to_ptr.vmem [resolvable:$true] %s233
          %239 = dma.hbm_to_vmem [thread:$0]  %s232, 512, %s234, %s221, 128, 128, 8
        $region36: #{tpu_custom_call.1} parent=31 // pred_fallthru
          _
      $region32: #{tpu_custom_call.1} parent=5 // pred_fallthru
        _
      %p240 = scmp.le.s32.totalorder 1, %s19
      %p241 = scmp.lt.s32.totalorder %s19, 3
      %p242 = pnand %p240, %p241
      %p243 = pneg %p242
      // Predicated region
      $region37: #{tpu_custom_call.1} parent=5 // pred_check
        _
      $region38: #{tpu_custom_call.1} parent=5 // pred_check_branch
        %245 = sbr.rel (%p242) target = $region40
      $region39: #{tpu_custom_call.1} parent=5 // pred_region
        %s246 = ssub.s32 %s19, 1
        %s247 = sand.u32 %s32, 1
        %s248 = scalar_lea.sflag [#allocation3], %s247
        %s249 = sand.u32 %s32, 1
        %s250 = smul.addr %s249, 32
        %s251 = scalar_lea.vmem [#allocation2], %s250
        // Predicated region
        $region41: #{tpu_custom_call.1} parent=39 // pred_check
          %p252 = pneg %p45
        $region42: #{tpu_custom_call.1} parent=39 // pred_check_branch
          %254 = sbr.rel (%p252) target = $region44
        $region43: #{tpu_custom_call.1} parent=39 // pred_region
          %256 = dma.done %s248, 512
        $region44: #{tpu_custom_call.1} parent=39 // pred_fallthru
          _
        // Predicated region
        $region45: #{tpu_custom_call.1} parent=39 // pred_check
          %p257 = pneg %p66
        $region46: #{tpu_custom_call.1} parent=39 // pred_check_branch
          %259 = sbr.rel (%p257) target = $region48
        $region47: #{tpu_custom_call.1} parent=39 // pred_region
          %261 = dma.done [#allocation6], 8192
        $region48: #{tpu_custom_call.1} parent=39 // pred_fallthru
          _
        // Predicated region
        $region49: #{tpu_custom_call.1} parent=39 // pred_check
          %p262 = pneg %p87
        $region50: #{tpu_custom_call.1} parent=39 // pred_check_branch
          %264 = sbr.rel (%p262) target = $region52
        $region51: #{tpu_custom_call.1} parent=39 // pred_region
          %266 = dma.done [#allocation6], 64
        $region52: #{tpu_custom_call.1} parent=39 // pred_fallthru
          _
        // Predicated region
        $region53: #{tpu_custom_call.1} parent=39 // pred_check
          %p267 = pneg %p108
        $region54: #{tpu_custom_call.1} parent=39 // pred_check_branch
          %269 = sbr.rel (%p267) target = $region56
        $region55: #{tpu_custom_call.1} parent=39 // pred_region
          %271 = dma.done [#allocation9], 8192
        $region56: #{tpu_custom_call.1} parent=39 // pred_fallthru
          _
        %s272 = sand.u32 %s32, 1
        %s273 = scalar_lea.sflag [#allocation3], %s272
        %s274 = sand.u32 %s32, 1
        %s275 = smul.addr %s274, 32
        %s276 = scalar_lea.vmem [#allocation2], %s275
        %p277 = pneg %p45
        %p278 = pneg %p42
        %p279 = pneg %p66
        %p280 = pneg %p63
        %p281 = pneg %p87
        %p282 = pneg %p84
        %p283 = pneg %p108
        %p284 = pneg %p105
        %p285 = pneg %p129
        %p286 = pneg %p126
        %p287 = pneg %p155
        %p288 = pneg %p152
        %s289 = sand.u32 %s142, 1
        %s290 = scalar_lea.sflag [#allocation4], %s289
        %s291 = sand.u32 %s142, 1
        %s292 = smul.addr %s291, 64
        %s293 = scalar_lea.vmem [#allocation10], %s292
        %s294 = smul.u32 4, %s24
        %s295 = smul.u32 4, %s24
        %v296 = vld [vmem:[%s251] sm:$0xff]
        %v297 = vld [vmem:[%s251 + $0x8] sm:$0xff]
        %v298 = vld [vmem:[%s251 + $0x10] sm:$0xff]
        %v299 = vld [vmem:[%s251 + $0x18] sm:$0xff]
        %v300 = vld [vmem:[#allocation5] sm:$0xff]
        %v301 = vld [vmem:[#allocation5 + $0x8] sm:$0xff]
        %v302 = vld [vmem:[#allocation5 + $0x10] sm:$0xff]
        %v303 = vld [vmem:[#allocation5 + $0x18] sm:$0xff]
        %v304 = vld [vmem:[#allocation5 + $0x20] sm:$0xff]
        %v305 = vld [vmem:[#allocation5 + $0x28] sm:$0xff]
        %v306 = vld [vmem:[#allocation5 + $0x30] sm:$0xff]
        %v307 = vld [vmem:[#allocation5 + $0x38] sm:$0xff]
        %v308 = vld [vmem:[#allocation5 + $0x40] sm:$0xff]
        %v309 = vld [vmem:[#allocation5 + $0x48] sm:$0xff]
        %v310 = vld [vmem:[#allocation5 + $0x50] sm:$0xff]
        %v311 = vld [vmem:[#allocation5 + $0x58] sm:$0xff]
        %v312 = vld [vmem:[#allocation5 + $0x60] sm:$0xff]
        %v313 = vld [vmem:[#allocation5 + $0x68] sm:$0xff]
        %v314 = vld [vmem:[#allocation5 + $0x70] sm:$0xff]
        %v315 = vld [vmem:[#allocation5 + $0x78] sm:$0xff]
        %v316 = vld [vmem:[#allocation5 + $0x80] sm:$0xff]
        %v317 = vld [vmem:[#allocation5 + $0x88] sm:$0xff]
        %v318 = vld [vmem:[#allocation5 + $0x90] sm:$0xff]
        %v319 = vld [vmem:[#allocation5 + $0x98] sm:$0xff]
        %v320 = vld [vmem:[#allocation5 + $0xa0] sm:$0xff]
        %v321 = vld [vmem:[#allocation5 + $0xa8] sm:$0xff]
        %v322 = vld [vmem:[#allocation5 + $0xb0] sm:$0xff]
        %v323 = vld [vmem:[#allocation5 + $0xb8] sm:$0xff]
        %v324 = vld [vmem:[#allocation5 + $0xc0] sm:$0xff]
        %v325 = vld [vmem:[#allocation5 + $0xc8] sm:$0xff]
        %v326 = vld [vmem:[#allocation5 + $0xd0] sm:$0xff]
        %v327 = vld [vmem:[#allocation5 + $0xd8] sm:$0xff]
        %v328 = vld [vmem:[#allocation5 + $0xe0] sm:$0xff]
        %v329 = vld [vmem:[#allocation5 + $0xe8] sm:$0xff]
        %v330 = vld [vmem:[#allocation5 + $0xf0] sm:$0xff]
        %v331 = vld [vmem:[#allocation5 + $0xf8] sm:$0xff]
        %v332 = vld [vmem:[#allocation5 + $0x100] sm:$0xff]
        %v333 = vld [vmem:[#allocation5 + $0x108] sm:$0xff]
        %v334 = vld [vmem:[#allocation5 + $0x110] sm:$0xff]
        %v335 = vld [vmem:[#allocation5 + $0x118] sm:$0xff]
        %v336 = vld [vmem:[#allocation5 + $0x120] sm:$0xff]
        %v337 = vld [vmem:[#allocation5 + $0x128] sm:$0xff]
        %v338 = vld [vmem:[#allocation5 + $0x130] sm:$0xff]
        %v339 = vld [vmem:[#allocation5 + $0x138] sm:$0xff]
        %v340 = vld [vmem:[#allocation5 + $0x140] sm:$0xff]
        %v341 = vld [vmem:[#allocation5 + $0x148] sm:$0xff]
        %v342 = vld [vmem:[#allocation5 + $0x150] sm:$0xff]
        %v343 = vld [vmem:[#allocation5 + $0x158] sm:$0xff]
        %v344 = vld [vmem:[#allocation5 + $0x160] sm:$0xff]
        %v345 = vld [vmem:[#allocation5 + $0x168] sm:$0xff]
        %v346 = vld [vmem:[#allocation5 + $0x170] sm:$0xff]
        %v347 = vld [vmem:[#allocation5 + $0x178] sm:$0xff]
        %v348 = vld [vmem:[#allocation5 + $0x180] sm:$0xff]
        %v349 = vld [vmem:[#allocation5 + $0x188] sm:$0xff]
        %v350 = vld [vmem:[#allocation5 + $0x190] sm:$0xff]
        %v351 = vld [vmem:[#allocation5 + $0x198] sm:$0xff]
        %v352 = vld [vmem:[#allocation5 + $0x1a0] sm:$0xff]
        %v353 = vld [vmem:[#allocation5 + $0x1a8] sm:$0xff]
        %v354 = vld [vmem:[#allocation5 + $0x1b0] sm:$0xff]
        %v355 = vld [vmem:[#allocation5 + $0x1b8] sm:$0xff]
        %v356 = vld [vmem:[#allocation5 + $0x1c0] sm:$0xff]
        %v357 = vld [vmem:[#allocation5 + $0x1c8] sm:$0xff]
        %v358 = vld [vmem:[#allocation5 + $0x1d0] sm:$0xff]
        %v359 = vld [vmem:[#allocation5 + $0x1d8] sm:$0xff]
        %v360 = vld [vmem:[#allocation5 + $0x1e0] sm:$0xff]
        %v361 = vld [vmem:[#allocation5 + $0x1e8] sm:$0xff]
        %v362 = vld [vmem:[#allocation5 + $0x1f0] sm:$0xff]
        %v363 = vld [vmem:[#allocation5 + $0x1f8] sm:$0xff]
        %v364 = vld [vmem:[#allocation7] sm:$0xf]
        %v366 = vperm.slane %v364, 0
        %v367 = vperm.slane %v364, 1
        %v368 = vperm.slane %v364, 2
        %v369 = vperm.slane %v364, 3
        %v378 = vunpack.c.l.b16 %v296
        %v379 = vunpack.c.h.b16 %v296
        %v380 = vunpack.c.l.b16 %v297
        %v381 = vunpack.c.h.b16 %v297
        %v382 = vunpack.c.l.b16 %v298
        %v383 = vunpack.c.h.b16 %v298
        %v384 = vunpack.c.l.b16 %v299
        %v385 = vunpack.c.h.b16 %v299
        %v386 = vpack.c.b16 %v380, %v378
        %v387 = vpack.c.b16 %v381, %v379
        %v388 = vpack.c.b16 %v384, %v382
        %v389 = vpack.c.b16 %v385, %v383
        %v458 = vunpack.c.l.b16 %v300
        %v459 = vunpack.c.h.b16 %v300
        %v460 = vunpack.c.l.b16 %v301
        %v461 = vunpack.c.h.b16 %v301
        %v462 = vunpack.c.l.b16 %v302
        %v463 = vunpack.c.h.b16 %v302
        %v464 = vunpack.c.l.b16 %v303
        %v465 = vunpack.c.h.b16 %v303
        %v466 = vunpack.c.l.b16 %v304
        %v467 = vunpack.c.h.b16 %v304
        %v468 = vunpack.c.l.b16 %v305
        %v469 = vunpack.c.h.b16 %v305
        %v470 = vunpack.c.l.b16 %v306
        %v471 = vunpack.c.h.b16 %v306
        %v472 = vunpack.c.l.b16 %v307
        %v473 = vunpack.c.h.b16 %v307
        %v474 = vunpack.c.l.b16 %v308
        %v475 = vunpack.c.h.b16 %v308
        %v476 = vunpack.c.l.b16 %v309
        %v477 = vunpack.c.h.b16 %v309
        %v478 = vunpack.c.l.b16 %v310
        %v479 = vunpack.c.h.b16 %v310
        %v480 = vunpack.c.l.b16 %v311
        %v481 = vunpack.c.h.b16 %v311
        %v482 = vunpack.c.l.b16 %v312
        %v483 = vunpack.c.h.b16 %v312
        %v484 = vunpack.c.l.b16 %v313
        %v485 = vunpack.c.h.b16 %v313
        %v486 = vunpack.c.l.b16 %v314
        %v487 = vunpack.c.h.b16 %v314
        %v488 = vunpack.c.l.b16 %v315
        %v489 = vunpack.c.h.b16 %v315
        %v490 = vunpack.c.l.b16 %v316
        %v491 = vunpack.c.h.b16 %v316
        %v492 = vunpack.c.l.b16 %v317
        %v493 = vunpack.c.h.b16 %v317
        %v494 = vunpack.c.l.b16 %v318
        %v495 = vunpack.c.h.b16 %v318
        %v496 = vunpack.c.l.b16 %v319
        %v497 = vunpack.c.h.b16 %v319
        %v498 = vunpack.c.l.b16 %v320
        %v499 = vunpack.c.h.b16 %v320
        %v500 = vunpack.c.l.b16 %v321
        %v501 = vunpack.c.h.b16 %v321
        %v502 = vunpack.c.l.b16 %v322
        %v503 = vunpack.c.h.b16 %v322
        %v504 = vunpack.c.l.b16 %v323
        %v505 = vunpack.c.h.b16 %v323
        %v506 = vunpack.c.l.b16 %v324
        %v507 = vunpack.c.h.b16 %v324
        %v508 = vunpack.c.l.b16 %v325
        %v509 = vunpack.c.h.b16 %v325
        %v510 = vunpack.c.l.b16 %v326
        %v511 = vunpack.c.h.b16 %v326
        %v512 = vunpack.c.l.b16 %v327
        %v513 = vunpack.c.h.b16 %v327
        %v514 = vunpack.c.l.b16 %v328
        %v515 = vunpack.c.h.b16 %v328
        %v516 = vunpack.c.l.b16 %v329
        %v517 = vunpack.c.h.b16 %v329
        %v518 = vunpack.c.l.b16 %v330
        %v519 = vunpack.c.h.b16 %v330
        %v520 = vunpack.c.l.b16 %v331
        %v521 = vunpack.c.h.b16 %v331
        %v522 = vunpack.c.l.b16 %v332
        %v523 = vunpack.c.h.b16 %v332
        %v524 = vunpack.c.l.b16 %v333
        %v525 = vunpack.c.h.b16 %v333
        %v526 = vunpack.c.l.b16 %v334
        %v527 = vunpack.c.h.b16 %v334
        %v528 = vunpack.c.l.b16 %v335
        %v529 = vunpack.c.h.b16 %v335
        %v530 = vunpack.c.l.b16 %v336
        %v531 = vunpack.c.h.b16 %v336
        %v532 = vunpack.c.l.b16 %v337
        %v533 = vunpack.c.h.b16 %v337
        %v534 = vunpack.c.l.b16 %v338
        %v535 = vunpack.c.h.b16 %v338
        %v536 = vunpack.c.l.b16 %v339
        %v537 = vunpack.c.h.b16 %v339
        %v538 = vunpack.c.l.b16 %v340
        %v539 = vunpack.c.h.b16 %v340
        %v540 = vunpack.c.l.b16 %v341
        %v541 = vunpack.c.h.b16 %v341
        %v542 = vunpack.c.l.b16 %v342
        %v543 = vunpack.c.h.b16 %v342
        %v544 = vunpack.c.l.b16 %v343
        %v545 = vunpack.c.h.b16 %v343
        %v546 = vunpack.c.l.b16 %v344
        %v547 = vunpack.c.h.b16 %v344
        %v548 = vunpack.c.l.b16 %v345
        %v549 = vunpack.c.h.b16 %v345
        %v550 = vunpack.c.l.b16 %v346
        %v551 = vunpack.c.h.b16 %v346
        %v552 = vunpack.c.l.b16 %v347
        %v553 = vunpack.c.h.b16 %v347
        %v554 = vunpack.c.l.b16 %v348
        %v555 = vunpack.c.h.b16 %v348
        %v556 = vunpack.c.l.b16 %v349
        %v557 = vunpack.c.h.b16 %v349
        %v558 = vunpack.c.l.b16 %v350
        %v559 = vunpack.c.h.b16 %v350
        %v560 = vunpack.c.l.b16 %v351
        %v561 = vunpack.c.h.b16 %v351
        %v562 = vunpack.c.l.b16 %v352
        %v563 = vunpack.c.h.b16 %v352
        %v564 = vunpack.c.l.b16 %v353
        %v565 = vunpack.c.h.b16 %v353
        %v566 = vunpack.c.l.b16 %v354
        %v567 = vunpack.c.h.b16 %v354
        %v568 = vunpack.c.l.b16 %v355
        %v569 = vunpack.c.h.b16 %v355
        %v570 = vunpack.c.l.b16 %v356
        %v571 = vunpack.c.h.b16 %v356
        %v572 = vunpack.c.l.b16 %v357
        %v573 = vunpack.c.h.b16 %v357
        %v574 = vunpack.c.l.b16 %v358
        %v575 = vunpack.c.h.b16 %v358
        %v576 = vunpack.c.l.b16 %v359
        %v577 = vunpack.c.h.b16 %v359
        %v578 = vunpack.c.l.b16 %v360
        %v579 = vunpack.c.h.b16 %v360
        %v580 = vunpack.c.l.b16 %v361
        %v581 = vunpack.c.h.b16 %v361
        %v582 = vunpack.c.l.b16 %v362
        %v583 = vunpack.c.h.b16 %v362
        %v584 = vunpack.c.l.b16 %v363
        %v585 = vunpack.c.h.b16 %v363
        %v586 = vpack.c.b16 %v462, %v458
        %v587 = vpack.c.b16 %v463, %v459
        %v588 = vpack.c.b16 %v464, %v460
        %v589 = vpack.c.b16 %v465, %v461
        %v590 = vpack.c.b16 %v470, %v466
        %v591 = vpack.c.b16 %v471, %v467
        %v592 = vpack.c.b16 %v472, %v468
        %v593 = vpack.c.b16 %v473, %v469
        %v594 = vpack.c.b16 %v478, %v474
        %v595 = vpack.c.b16 %v479, %v475
        %v596 = vpack.c.b16 %v480, %v476
        %v597 = vpack.c.b16 %v481, %v477
        %v598 = vpack.c.b16 %v486, %v482
        %v599 = vpack.c.b16 %v487, %v483
        %v600 = vpack.c.b16 %v488, %v484
        %v601 = vpack.c.b16 %v489, %v485
        %v602 = vpack.c.b16 %v494, %v490
        %v603 = vpack.c.b16 %v495, %v491
        %v604 = vpack.c.b16 %v496, %v492
        %v605 = vpack.c.b16 %v497, %v493
        %v606 = vpack.c.b16 %v502, %v498
        %v607 = vpack.c.b16 %v503, %v499
        %v608 = vpack.c.b16 %v504, %v500
        %v609 = vpack.c.b16 %v505, %v501
        %v610 = vpack.c.b16 %v510, %v506
        %v611 = vpack.c.b16 %v511, %v507
        %v612 = vpack.c.b16 %v512, %v508
        %v613 = vpack.c.b16 %v513, %v509
        %v614 = vpack.c.b16 %v518, %v514
        %v615 = vpack.c.b16 %v519, %v515
        %v616 = vpack.c.b16 %v520, %v516
        %v617 = vpack.c.b16 %v521, %v517
        %v618 = vpack.c.b16 %v526, %v522
        %v619 = vpack.c.b16 %v527, %v523
        %v620 = vpack.c.b16 %v528, %v524
        %v621 = vpack.c.b16 %v529, %v525
        %v622 = vpack.c.b16 %v534, %v530
        %v623 = vpack.c.b16 %v535, %v531
        %v624 = vpack.c.b16 %v536, %v532
        %v625 = vpack.c.b16 %v537, %v533
        %v626 = vpack.c.b16 %v542, %v538
        %v627 = vpack.c.b16 %v543, %v539
        %v628 = vpack.c.b16 %v544, %v540
        %v629 = vpack.c.b16 %v545, %v541
        %v630 = vpack.c.b16 %v550, %v546
        %v631 = vpack.c.b16 %v551, %v547
        %v632 = vpack.c.b16 %v552, %v548
        %v633 = vpack.c.b16 %v553, %v549
        %v634 = vpack.c.b16 %v558, %v554
        %v635 = vpack.c.b16 %v559, %v555
        %v636 = vpack.c.b16 %v560, %v556
        %v637 = vpack.c.b16 %v561, %v557
        %v638 = vpack.c.b16 %v566, %v562
        %v639 = vpack.c.b16 %v567, %v563
        %v640 = vpack.c.b16 %v568, %v564
        %v641 = vpack.c.b16 %v569, %v565
        %v642 = vpack.c.b16 %v574, %v570
        %v643 = vpack.c.b16 %v575, %v571
        %v644 = vpack.c.b16 %v576, %v572
        %v645 = vpack.c.b16 %v577, %v573
        %v646 = vpack.c.b16 %v582, %v578
        %v647 = vpack.c.b16 %v583, %v579
        %v648 = vpack.c.b16 %v584, %v580
        %v649 = vpack.c.b16 %v585, %v581
        %714 = vmatpush.bf16.msra.mxu0 %v614
        %715 = vmatpush.bf16.msra.mxu0 %v610
        %716 = vmatpush.bf16.msra.mxu0 %v606
        %717 = vmatpush.bf16.msra.mxu0 %v602
        %718 = vmatpush.bf16.msra.mxu0 %v598
        %719 = vmatpush.bf16.msra.mxu0 %v594
        %720 = vmatpush.bf16.msra.mxu0 %v590
        %721 = vmatpush.bf16.msra.mxu0 %v586
        %722 = vmatmul.bf16.gmra.mxu0 %v386
        %v723 = vpop.f32.mrf.mxu0
        %v724 = vadd.f32 %v366, %v723
        %v725 = vpop.f32.mrf.mxu0
        %v726 = vadd.f32 %v366, %v725
        %727 = vmatmul.bf16.gmra.mxu0 %v388
        %v728 = vpop.f32.mrf.mxu0
        %v729 = vadd.f32 %v366, %v728
        %v730 = vpop.f32.mrf.mxu0
        %v731 = vadd.f32 %v366, %v730
        %732 = vdwg.mxu0
        %733 = vmatpush.bf16.msra.mxu0 %v646
        %734 = vmatpush.bf16.msra.mxu0 %v642
        %735 = vmatpush.bf16.msra.mxu0 %v638
        %736 = vmatpush.bf16.msra.mxu0 %v634
        %737 = vmatpush.bf16.msra.mxu0 %v630
        %738 = vmatpush.bf16.msra.mxu0 %v626
        %739 = vmatpush.bf16.msra.mxu0 %v622
        %740 = vmatpush.bf16.msra.mxu0 %v618
        %741 = vmatmul.bf16.gmra.mxu0 %v387
        %v742 = vpop.f32.mrf.mxu0
        %v743 = vadd.f32 %v724, %v742
        %v744 = vpop.f32.mrf.mxu0
        %v745 = vadd.f32 %v726, %v744
        %746 = vmatmul.bf16.gmra.mxu0 %v389
        %v747 = vpop.f32.mrf.mxu0
        %v748 = vadd.f32 %v729, %v747
        %v749 = vpop.f32.mrf.mxu0
        %v750 = vadd.f32 %v731, %v749
        %751 = vdwg.mxu0
        %752 = vmatpush.bf16.msra.mxu0 %v615
        %753 = vmatpush.bf16.msra.mxu0 %v611
        %754 = vmatpush.bf16.msra.mxu0 %v607
        %755 = vmatpush.bf16.msra.mxu0 %v603
        %756 = vmatpush.bf16.msra.mxu0 %v599
        %757 = vmatpush.bf16.msra.mxu0 %v595
        %758 = vmatpush.bf16.msra.mxu0 %v591
        %759 = vmatpush.bf16.msra.mxu0 %v587
        %760 = vmatmul.bf16.gmra.mxu0 %v386
        %v761 = vpop.f32.mrf.mxu0
        %v762 = vadd.f32 %v367, %v761
        %v763 = vpop.f32.mrf.mxu0
        %v764 = vadd.f32 %v367, %v763
        %765 = vmatmul.bf16.gmra.mxu0 %v388
        %v766 = vpop.f32.mrf.mxu0
        %v767 = vadd.f32 %v367, %v766
        %v768 = vpop.f32.mrf.mxu0
        %v769 = vadd.f32 %v367, %v768
        %770 = vdwg.mxu0
        %771 = vmatpush.bf16.msra.mxu0 %v647
        %772 = vmatpush.bf16.msra.mxu0 %v643
        %773 = vmatpush.bf16.msra.mxu0 %v639
        %774 = vmatpush.bf16.msra.mxu0 %v635
        %775 = vmatpush.bf16.msra.mxu0 %v631
        %776 = vmatpush.bf16.msra.mxu0 %v627
        %777 = vmatpush.bf16.msra.mxu0 %v623
        %778 = vmatpush.bf16.msra.mxu0 %v619
        %779 = vmatmul.bf16.gmra.mxu0 %v387
        %v780 = vpop.f32.mrf.mxu0
        %v781 = vadd.f32 %v762, %v780
        %v782 = vpop.f32.mrf.mxu0
        %v783 = vadd.f32 %v764, %v782
        %784 = vmatmul.bf16.gmra.mxu0 %v389
        %v785 = vpop.f32.mrf.mxu0
        %v786 = vadd.f32 %v767, %v785
        %v787 = vpop.f32.mrf.mxu0
        %v788 = vadd.f32 %v769, %v787
        %789 = vdwg.mxu0
        %790 = vmatpush.bf16.msra.mxu0 %v616
        %791 = vmatpush.bf16.msra.mxu0 %v612
        %792 = vmatpush.bf16.msra.mxu0 %v608
        %793 = vmatpush.bf16.msra.mxu0 %v604
        %794 = vmatpush.bf16.msra.mxu0 %v600
        %795 = vmatpush.bf16.msra.mxu0 %v596
        %796 = vmatpush.bf16.msra.mxu0 %v592
        %797 = vmatpush.bf16.msra.mxu0 %v588
        %798 = vmatmul.bf16.gmra.mxu0 %v386
        %v799 = vpop.f32.mrf.mxu0
        %v800 = vadd.f32 %v368, %v799
        %v801 = vpop.f32.mrf.mxu0
        %v802 = vadd.f32 %v368, %v801
        %803 = vmatmul.bf16.gmra.mxu0 %v388
        %v804 = vpop.f32.mrf.mxu0
        %v805 = vadd.f32 %v368, %v804
        %v806 = vpop.f32.mrf.mxu0
        %v807 = vadd.f32 %v368, %v806
        %808 = vdwg.mxu0
        %809 = vmatpush.bf16.msra.mxu0 %v648
        %810 = vmatpush.bf16.msra.mxu0 %v644
        %811 = vmatpush.bf16.msra.mxu0 %v640
        %812 = vmatpush.bf16.msra.mxu0 %v636
        %813 = vmatpush.bf16.msra.mxu0 %v632
        %814 = vmatpush.bf16.msra.mxu0 %v628
        %815 = vmatpush.bf16.msra.mxu0 %v624
        %816 = vmatpush.bf16.msra.mxu0 %v620
        %817 = vmatmul.bf16.gmra.mxu0 %v387
        %v818 = vpop.f32.mrf.mxu0
        %v819 = vadd.f32 %v800, %v818
        %v820 = vpop.f32.mrf.mxu0
        %v821 = vadd.f32 %v802, %v820
        %822 = vmatmul.bf16.gmra.mxu0 %v389
        %v823 = vpop.f32.mrf.mxu0
        %v824 = vadd.f32 %v805, %v823
        %v825 = vpop.f32.mrf.mxu0
        %v826 = vadd.f32 %v807, %v825
        %827 = vdwg.mxu0
        %828 = vmatpush.bf16.msra.mxu0 %v617
        %829 = vmatpush.bf16.msra.mxu0 %v613
        %830 = vmatpush.bf16.msra.mxu0 %v609
        %831 = vmatpush.bf16.msra.mxu0 %v605
        %832 = vmatpush.bf16.msra.mxu0 %v601
        %833 = vmatpush.bf16.msra.mxu0 %v597
        %834 = vmatpush.bf16.msra.mxu0 %v593
        %835 = vmatpush.bf16.msra.mxu0 %v589
        %836 = vmatmul.bf16.gmra.mxu0 %v386
        %v837 = vpop.f32.mrf.mxu0
        %v838 = vadd.f32 %v369, %v837
        %v839 = vpop.f32.mrf.mxu0
        %v840 = vadd.f32 %v369, %v839
        %841 = vmatmul.bf16.gmra.mxu0 %v388
        %v842 = vpop.f32.mrf.mxu0
        %v843 = vadd.f32 %v369, %v842
        %v844 = vpop.f32.mrf.mxu0
        %v845 = vadd.f32 %v369, %v844
        %846 = vdwg.mxu0
        %847 = vmatpush.bf16.msra.mxu0 %v649
        %848 = vmatpush.bf16.msra.mxu0 %v645
        %849 = vmatpush.bf16.msra.mxu0 %v641
        %850 = vmatpush.bf16.msra.mxu0 %v637
        %851 = vmatpush.bf16.msra.mxu0 %v633
        %852 = vmatpush.bf16.msra.mxu0 %v629
        %853 = vmatpush.bf16.msra.mxu0 %v625
        %854 = vmatpush.bf16.msra.mxu0 %v621
        %855 = vmatmul.bf16.gmra.mxu0 %v387
        %v856 = vpop.f32.mrf.mxu0
        %v857 = vadd.f32 %v838, %v856
        %v858 = vpop.f32.mrf.mxu0
        %v859 = vadd.f32 %v840, %v858
        %860 = vmatmul.bf16.gmra.mxu0 %v389
        %v861 = vpop.f32.mrf.mxu0
        %v862 = vadd.f32 %v843, %v861
        %v863 = vpop.f32.mrf.mxu0
        %v864 = vadd.f32 %v845, %v863
        %865 = vdwg.mxu0
        %v866 = vmax.f32 %v743, 0.0
        %v867 = vmax.f32 %v781, 0.0
        %v868 = vmax.f32 %v819, 0.0
        %v869 = vmax.f32 %v857, 0.0
        %v870 = vmax.f32 %v745, 0.0
        %v871 = vmax.f32 %v783, 0.0
        %v872 = vmax.f32 %v821, 0.0
        %v873 = vmax.f32 %v859, 0.0
        %v874 = vmax.f32 %v748, 0.0
        %v875 = vmax.f32 %v786, 0.0
        %v876 = vmax.f32 %v824, 0.0
        %v877 = vmax.f32 %v862, 0.0
        %v878 = vmax.f32 %v750, 0.0
        %v879 = vmax.f32 %v788, 0.0
        %v880 = vmax.f32 %v826, 0.0
        %v881 = vmax.f32 %v864, 0.0
        %v882 = vpack.c.bf16 %v870, %v866
        %v883 = vpack.c.bf16 %v871, %v867
        %v884 = vpack.c.bf16 %v872, %v868
        %v885 = vpack.c.bf16 %v873, %v869
        %v886 = vpack.c.bf16 %v878, %v874
        %v887 = vpack.c.bf16 %v879, %v875
        %v888 = vpack.c.bf16 %v880, %v876
        %v889 = vpack.c.bf16 %v881, %v877
        %v890 = vld [vmem:[#allocation8] sm:$0xff]
        %v891 = vld [vmem:[#allocation8 + $0x8] sm:$0xff]
        %v892 = vld [vmem:[#allocation8 + $0x10] sm:$0xff]
        %v893 = vld [vmem:[#allocation8 + $0x18] sm:$0xff]
        %v894 = vld [vmem:[#allocation8 + $0x20] sm:$0xff]
        %v895 = vld [vmem:[#allocation8 + $0x28] sm:$0xff]
        %v896 = vld [vmem:[#allocation8 + $0x30] sm:$0xff]
        %v897 = vld [vmem:[#allocation8 + $0x38] sm:$0xff]
        %v898 = vld [vmem:[#allocation8 + $0x40] sm:$0xff]
        %v899 = vld [vmem:[#allocation8 + $0x48] sm:$0xff]
        %v900 = vld [vmem:[#allocation8 + $0x50] sm:$0xff]
        %v901 = vld [vmem:[#allocation8 + $0x58] sm:$0xff]
        %v902 = vld [vmem:[#allocation8 + $0x60] sm:$0xff]
        %v903 = vld [vmem:[#allocation8 + $0x68] sm:$0xff]
        %v904 = vld [vmem:[#allocation8 + $0x70] sm:$0xff]
        %v905 = vld [vmem:[#allocation8 + $0x78] sm:$0xff]
        %v906 = vld [vmem:[#allocation8 + $0x80] sm:$0xff]
        %v907 = vld [vmem:[#allocation8 + $0x88] sm:$0xff]
        %v908 = vld [vmem:[#allocation8 + $0x90] sm:$0xff]
        %v909 = vld [vmem:[#allocation8 + $0x98] sm:$0xff]
        %v910 = vld [vmem:[#allocation8 + $0xa0] sm:$0xff]
        %v911 = vld [vmem:[#allocation8 + $0xa8] sm:$0xff]
        %v912 = vld [vmem:[#allocation8 + $0xb0] sm:$0xff]
        %v913 = vld [vmem:[#allocation8 + $0xb8] sm:$0xff]
        %v914 = vld [vmem:[#allocation8 + $0xc0] sm:$0xff]
        %v915 = vld [vmem:[#allocation8 + $0xc8] sm:$0xff]
        %v916 = vld [vmem:[#allocation8 + $0xd0] sm:$0xff]
        %v917 = vld [vmem:[#allocation8 + $0xd8] sm:$0xff]
        %v918 = vld [vmem:[#allocation8 + $0xe0] sm:$0xff]
        %v919 = vld [vmem:[#allocation8 + $0xe8] sm:$0xff]
        %v920 = vld [vmem:[#allocation8 + $0xf0] sm:$0xff]
        %v921 = vld [vmem:[#allocation8 + $0xf8] sm:$0xff]
        %v922 = vld [vmem:[#allocation8 + $0x100] sm:$0xff]
        %v923 = vld [vmem:[#allocation8 + $0x108] sm:$0xff]
        %v924 = vld [vmem:[#allocation8 + $0x110] sm:$0xff]
        %v925 = vld [vmem:[#allocation8 + $0x118] sm:$0xff]
        %v926 = vld [vmem:[#allocation8 + $0x120] sm:$0xff]
        %v927 = vld [vmem:[#allocation8 + $0x128] sm:$0xff]
        %v928 = vld [vmem:[#allocation8 + $0x130] sm:$0xff]
        %v929 = vld [vmem:[#allocation8 + $0x138] sm:$0xff]
        %v930 = vld [vmem:[#allocation8 + $0x140] sm:$0xff]
        %v931 = vld [vmem:[#allocation8 + $0x148] sm:$0xff]
        %v932 = vld [vmem:[#allocation8 + $0x150] sm:$0xff]
        %v933 = vld [vmem:[#allocation8 + $0x158] sm:$0xff]
        %v934 = vld [vmem:[#allocation8 + $0x160] sm:$0xff]
        %v935 = vld [vmem:[#allocation8 + $0x168] sm:$0xff]
        %v936 = vld [vmem:[#allocation8 + $0x170] sm:$0xff]
        %v937 = vld [vmem:[#allocation8 + $0x178] sm:$0xff]
        %v938 = vld [vmem:[#allocation8 + $0x180] sm:$0xff]
        %v939 = vld [vmem:[#allocation8 + $0x188] sm:$0xff]
        %v940 = vld [vmem:[#allocation8 + $0x190] sm:$0xff]
        %v941 = vld [vmem:[#allocation8 + $0x198] sm:$0xff]
        %v942 = vld [vmem:[#allocation8 + $0x1a0] sm:$0xff]
        %v943 = vld [vmem:[#allocation8 + $0x1a8] sm:$0xff]
        %v944 = vld [vmem:[#allocation8 + $0x1b0] sm:$0xff]
        %v945 = vld [vmem:[#allocation8 + $0x1b8] sm:$0xff]
        %v946 = vld [vmem:[#allocation8 + $0x1c0] sm:$0xff]
        %v947 = vld [vmem:[#allocation8 + $0x1c8] sm:$0xff]
        %v948 = vld [vmem:[#allocation8 + $0x1d0] sm:$0xff]
        %v949 = vld [vmem:[#allocation8 + $0x1d8] sm:$0xff]
        %v950 = vld [vmem:[#allocation8 + $0x1e0] sm:$0xff]
        %v951 = vld [vmem:[#allocation8 + $0x1e8] sm:$0xff]
        %v952 = vld [vmem:[#allocation8 + $0x1f0] sm:$0xff]
        %v953 = vld [vmem:[#allocation8 + $0x1f8] sm:$0xff]
        %v954 = vld [vmem:[%s4] sm:$0x3]
        %v956 = vperm.slane %v954, 0
        %v957 = vperm.slane %v954, 1
        %v1024 = vunpack.c.l.b16 %v890
        %v1025 = vunpack.c.h.b16 %v890
        %v1026 = vunpack.c.l.b16 %v891
        %v1027 = vunpack.c.h.b16 %v891
        %v1028 = vunpack.c.l.b16 %v892
        %v1029 = vunpack.c.h.b16 %v892
        %v1030 = vunpack.c.l.b16 %v893
        %v1031 = vunpack.c.h.b16 %v893
        %v1032 = vunpack.c.l.b16 %v894
        %v1033 = vunpack.c.h.b16 %v894
        %v1034 = vunpack.c.l.b16 %v895
        %v1035 = vunpack.c.h.b16 %v895
        %v1036 = vunpack.c.l.b16 %v896
        %v1037 = vunpack.c.h.b16 %v896
        %v1038 = vunpack.c.l.b16 %v897
        %v1039 = vunpack.c.h.b16 %v897
        %v1040 = vunpack.c.l.b16 %v898
        %v1041 = vunpack.c.h.b16 %v898
        %v1042 = vunpack.c.l.b16 %v899
        %v1043 = vunpack.c.h.b16 %v899
        %v1044 = vunpack.c.l.b16 %v900
        %v1045 = vunpack.c.h.b16 %v900
        %v1046 = vunpack.c.l.b16 %v901
        %v1047 = vunpack.c.h.b16 %v901
        %v1048 = vunpack.c.l.b16 %v902
        %v1049 = vunpack.c.h.b16 %v902
        %v1050 = vunpack.c.l.b16 %v903
        %v1051 = vunpack.c.h.b16 %v903
        %v1052 = vunpack.c.l.b16 %v904
        %v1053 = vunpack.c.h.b16 %v904
        %v1054 = vunpack.c.l.b16 %v905
        %v1055 = vunpack.c.h.b16 %v905
        %v1056 = vunpack.c.l.b16 %v906
        %v1057 = vunpack.c.h.b16 %v906
        %v1058 = vunpack.c.l.b16 %v907
        %v1059 = vunpack.c.h.b16 %v907
        %v1060 = vunpack.c.l.b16 %v908
        %v1061 = vunpack.c.h.b16 %v908
        %v1062 = vunpack.c.l.b16 %v909
        %v1063 = vunpack.c.h.b16 %v909
        %v1064 = vunpack.c.l.b16 %v910
        %v1065 = vunpack.c.h.b16 %v910
        %v1066 = vunpack.c.l.b16 %v911
        %v1067 = vunpack.c.h.b16 %v911
        %v1068 = vunpack.c.l.b16 %v912
        %v1069 = vunpack.c.h.b16 %v912
        %v1070 = vunpack.c.l.b16 %v913
        %v1071 = vunpack.c.h.b16 %v913
        %v1072 = vunpack.c.l.b16 %v914
        %v1073 = vunpack.c.h.b16 %v914
        %v1074 = vunpack.c.l.b16 %v915
        %v1075 = vunpack.c.h.b16 %v915
        %v1076 = vunpack.c.l.b16 %v916
        %v1077 = vunpack.c.h.b16 %v916
        %v1078 = vunpack.c.l.b16 %v917
        %v1079 = vunpack.c.h.b16 %v917
        %v1080 = vunpack.c.l.b16 %v918
        %v1081 = vunpack.c.h.b16 %v918
        %v1082 = vunpack.c.l.b16 %v919
        %v1083 = vunpack.c.h.b16 %v919
        %v1084 = vunpack.c.l.b16 %v920
        %v1085 = vunpack.c.h.b16 %v920
        %v1086 = vunpack.c.l.b16 %v921
        %v1087 = vunpack.c.h.b16 %v921
        %v1088 = vunpack.c.l.b16 %v922
        %v1089 = vunpack.c.h.b16 %v922
        %v1090 = vunpack.c.l.b16 %v923
        %v1091 = vunpack.c.h.b16 %v923
        %v1092 = vunpack.c.l.b16 %v924
        %v1093 = vunpack.c.h.b16 %v924
        %v1094 = vunpack.c.l.b16 %v925
        %v1095 = vunpack.c.h.b16 %v925
        %v1096 = vunpack.c.l.b16 %v926
        %v1097 = vunpack.c.h.b16 %v926
        %v1098 = vunpack.c.l.b16 %v927
        %v1099 = vunpack.c.h.b16 %v927
        %v1100 = vunpack.c.l.b16 %v928
        %v1101 = vunpack.c.h.b16 %v928
        %v1102 = vunpack.c.l.b16 %v929
        %v1103 = vunpack.c.h.b16 %v929
        %v1104 = vunpack.c.l.b16 %v930
        %v1105 = vunpack.c.h.b16 %v930
        %v1106 = vunpack.c.l.b16 %v931
        %v1107 = vunpack.c.h.b16 %v931
        %v1108 = vunpack.c.l.b16 %v932
        %v1109 = vunpack.c.h.b16 %v932
        %v1110 = vunpack.c.l.b16 %v933
        %v1111 = vunpack.c.h.b16 %v933
        %v1112 = vunpack.c.l.b16 %v934
        %v1113 = vunpack.c.h.b16 %v934
        %v1114 = vunpack.c.l.b16 %v935
        %v1115 = vunpack.c.h.b16 %v935
        %v1116 = vunpack.c.l.b16 %v936
        %v1117 = vunpack.c.h.b16 %v936
        %v1118 = vunpack.c.l.b16 %v937
        %v1119 = vunpack.c.h.b16 %v937
        %v1120 = vunpack.c.l.b16 %v938
        %v1121 = vunpack.c.h.b16 %v938
        %v1122 = vunpack.c.l.b16 %v939
        %v1123 = vunpack.c.h.b16 %v939
        %v1124 = vunpack.c.l.b16 %v940
        %v1125 = vunpack.c.h.b16 %v940
        %v1126 = vunpack.c.l.b16 %v941
        %v1127 = vunpack.c.h.b16 %v941
        %v1128 = vunpack.c.l.b16 %v942
        %v1129 = vunpack.c.h.b16 %v942
        %v1130 = vunpack.c.l.b16 %v943
        %v1131 = vunpack.c.h.b16 %v943
        %v1132 = vunpack.c.l.b16 %v944
        %v1133 = vunpack.c.h.b16 %v944
        %v1134 = vunpack.c.l.b16 %v945
        %v1135 = vunpack.c.h.b16 %v945
        %v1136 = vunpack.c.l.b16 %v946
        %v1137 = vunpack.c.h.b16 %v946
        %v1138 = vunpack.c.l.b16 %v947
        %v1139 = vunpack.c.h.b16 %v947
        %v1140 = vunpack.c.l.b16 %v948
        %v1141 = vunpack.c.h.b16 %v948
        %v1142 = vunpack.c.l.b16 %v949
        %v1143 = vunpack.c.h.b16 %v949
        %v1144 = vunpack.c.l.b16 %v950
        %v1145 = vunpack.c.h.b16 %v950
        %v1146 = vunpack.c.l.b16 %v951
        %v1147 = vunpack.c.h.b16 %v951
        %v1148 = vunpack.c.l.b16 %v952
        %v1149 = vunpack.c.h.b16 %v952
        %v1150 = vunpack.c.l.b16 %v953
        %v1151 = vunpack.c.h.b16 %v953
        %v1152 = vpack.c.b16 %v1026, %v1024
        %v1153 = vpack.c.b16 %v1027, %v1025
        %v1154 = vpack.c.b16 %v1030, %v1028
        %v1155 = vpack.c.b16 %v1031, %v1029
        %v1156 = vpack.c.b16 %v1034, %v1032
        %v1157 = vpack.c.b16 %v1035, %v1033
        %v1158 = vpack.c.b16 %v1038, %v1036
        %v1159 = vpack.c.b16 %v1039, %v1037
        %v1160 = vpack.c.b16 %v1042, %v1040
        %v1161 = vpack.c.b16 %v1043, %v1041
        %v1162 = vpack.c.b16 %v1046, %v1044
        %v1163 = vpack.c.b16 %v1047, %v1045
        %v1164 = vpack.c.b16 %v1050, %v1048
        %v1165 = vpack.c.b16 %v1051, %v1049
        %v1166 = vpack.c.b16 %v1054, %v1052
        %v1167 = vpack.c.b16 %v1055, %v1053
        %v1168 = vpack.c.b16 %v1058, %v1056
        %v1169 = vpack.c.b16 %v1059, %v1057
        %v1170 = vpack.c.b16 %v1062, %v1060
        %v1171 = vpack.c.b16 %v1063, %v1061
        %v1172 = vpack.c.b16 %v1066, %v1064
        %v1173 = vpack.c.b16 %v1067, %v1065
        %v1174 = vpack.c.b16 %v1070, %v1068
        %v1175 = vpack.c.b16 %v1071, %v1069
        %v1176 = vpack.c.b16 %v1074, %v1072
        %v1177 = vpack.c.b16 %v1075, %v1073
        %v1178 = vpack.c.b16 %v1078, %v1076
        %v1179 = vpack.c.b16 %v1079, %v1077
        %v1180 = vpack.c.b16 %v1082, %v1080
        %v1181 = vpack.c.b16 %v1083, %v1081
        %v1182 = vpack.c.b16 %v1086, %v1084
        %v1183 = vpack.c.b16 %v1087, %v1085
        %v1184 = vpack.c.b16 %v1090, %v1088
        %v1185 = vpack.c.b16 %v1091, %v1089
        %v1186 = vpack.c.b16 %v1094, %v1092
        %v1187 = vpack.c.b16 %v1095, %v1093
        %v1188 = vpack.c.b16 %v1098, %v1096
        %v1189 = vpack.c.b16 %v1099, %v1097
        %v1190 = vpack.c.b16 %v1102, %v1100
        %v1191 = vpack.c.b16 %v1103, %v1101
        %v1192 = vpack.c.b16 %v1106, %v1104
        %v1193 = vpack.c.b16 %v1107, %v1105
        %v1194 = vpack.c.b16 %v1110, %v1108
        %v1195 = vpack.c.b16 %v1111, %v1109
        %v1196 = vpack.c.b16 %v1114, %v1112
        %v1197 = vpack.c.b16 %v1115, %v1113
        %v1198 = vpack.c.b16 %v1118, %v1116
        %v1199 = vpack.c.b16 %v1119, %v1117
        %v1200 = vpack.c.b16 %v1122, %v1120
        %v1201 = vpack.c.b16 %v1123, %v1121
        %v1202 = vpack.c.b16 %v1126, %v1124
        %v1203 = vpack.c.b16 %v1127, %v1125
        %v1204 = vpack.c.b16 %v1130, %v1128
        %v1205 = vpack.c.b16 %v1131, %v1129
        %v1206 = vpack.c.b16 %v1134, %v1132
        %v1207 = vpack.c.b16 %v1135, %v1133
        %v1208 = vpack.c.b16 %v1138, %v1136
        %v1209 = vpack.c.b16 %v1139, %v1137
        %v1210 = vpack.c.b16 %v1142, %v1140
        %v1211 = vpack.c.b16 %v1143, %v1141
        %v1212 = vpack.c.b16 %v1146, %v1144
        %v1213 = vpack.c.b16 %v1147, %v1145
        %v1214 = vpack.c.b16 %v1150, %v1148
        %v1215 = vpack.c.b16 %v1151, %v1149
        %1280 = vmatpush.bf16.msra.mxu0 %v1166
        %1281 = vmatpush.bf16.msra.mxu0 %v1164
        %1282 = vmatpush.bf16.msra.mxu0 %v1162
        %1283 = vmatpush.bf16.msra.mxu0 %v1160
        %1284 = vmatpush.bf16.msra.mxu0 %v1158
        %1285 = vmatpush.bf16.msra.mxu0 %v1156
        %1286 = vmatpush.bf16.msra.mxu0 %v1154
        %1287 = vmatpush.bf16.msra.mxu0 %v1152
        %1288 = vmatmul.bf16.gmra.mxu0 %v882
        %v1289 = vpop.f32.mrf.mxu0
        %v1290 = vadd.f32 %v956, %v1289
        %v1291 = vpop.f32.mrf.mxu0
        %v1292 = vadd.f32 %v956, %v1291
        %1293 = vmatmul.bf16.gmra.mxu0 %v886
        %v1294 = vpop.f32.mrf.mxu0
        %v1295 = vadd.f32 %v956, %v1294
        %v1296 = vpop.f32.mrf.mxu0
        %v1297 = vadd.f32 %v956, %v1296
        %1298 = vdwg.mxu0
        %1299 = vmatpush.bf16.msra.mxu0 %v1182
        %1300 = vmatpush.bf16.msra.mxu0 %v1180
        %1301 = vmatpush.bf16.msra.mxu0 %v1178
        %1302 = vmatpush.bf16.msra.mxu0 %v1176
        %1303 = vmatpush.bf16.msra.mxu0 %v1174
        %1304 = vmatpush.bf16.msra.mxu0 %v1172
        %1305 = vmatpush.bf16.msra.mxu0 %v1170
        %1306 = vmatpush.bf16.msra.mxu0 %v1168
        %1307 = vmatmul.bf16.gmra.mxu0 %v883
        %v1308 = vpop.f32.mrf.mxu0
        %v1309 = vadd.f32 %v1290, %v1308
        %v1310 = vpop.f32.mrf.mxu0
        %v1311 = vadd.f32 %v1292, %v1310
        %1312 = vmatmul.bf16.gmra.mxu0 %v887
        %v1313 = vpop.f32.mrf.mxu0
        %v1314 = vadd.f32 %v1295, %v1313
        %v1315 = vpop.f32.mrf.mxu0
        %v1316 = vadd.f32 %v1297, %v1315
        %1317 = vdwg.mxu0
        %1318 = vmatpush.bf16.msra.mxu0 %v1198
        %1319 = vmatpush.bf16.msra.mxu0 %v1196
        %1320 = vmatpush.bf16.msra.mxu0 %v1194
        %1321 = vmatpush.bf16.msra.mxu0 %v1192
        %1322 = vmatpush.bf16.msra.mxu0 %v1190
        %1323 = vmatpush.bf16.msra.mxu0 %v1188
        %1324 = vmatpush.bf16.msra.mxu0 %v1186
        %1325 = vmatpush.bf16.msra.mxu0 %v1184
        %1326 = vmatmul.bf16.gmra.mxu0 %v884
        %v1327 = vpop.f32.mrf.mxu0
        %v1328 = vadd.f32 %v1309, %v1327
        %v1329 = vpop.f32.mrf.mxu0
        %v1330 = vadd.f32 %v1311, %v1329
        %1331 = vmatmul.bf16.gmra.mxu0 %v888
        %v1332 = vpop.f32.mrf.mxu0
        %v1333 = vadd.f32 %v1314, %v1332
        %v1334 = vpop.f32.mrf.mxu0
        %v1335 = vadd.f32 %v1316, %v1334
        %1336 = vdwg.mxu0
        %1337 = vmatpush.bf16.msra.mxu0 %v1214
        %1338 = vmatpush.bf16.msra.mxu0 %v1212
        %1339 = vmatpush.bf16.msra.mxu0 %v1210
        %1340 = vmatpush.bf16.msra.mxu0 %v1208
        %1341 = vmatpush.bf16.msra.mxu0 %v1206
        %1342 = vmatpush.bf16.msra.mxu0 %v1204
        %1343 = vmatpush.bf16.msra.mxu0 %v1202
        %1344 = vmatpush.bf16.msra.mxu0 %v1200
        %1345 = vmatmul.bf16.gmra.mxu0 %v885
        %v1346 = vpop.f32.mrf.mxu0
        %v1347 = vadd.f32 %v1328, %v1346
        %v1348 = vpop.f32.mrf.mxu0
        %v1349 = vadd.f32 %v1330, %v1348
        %1350 = vmatmul.bf16.gmra.mxu0 %v889
        %v1351 = vpop.f32.mrf.mxu0
        %v1352 = vadd.f32 %v1333, %v1351
        %v1353 = vpop.f32.mrf.mxu0
        %v1354 = vadd.f32 %v1335, %v1353
        %1355 = vdwg.mxu0
        %1356 = vmatpush.bf16.msra.mxu0 %v1167
        %1357 = vmatpush.bf16.msra.mxu0 %v1165
        %1358 = vmatpush.bf16.msra.mxu0 %v1163
        %1359 = vmatpush.bf16.msra.mxu0 %v1161
        %1360 = vmatpush.bf16.msra.mxu0 %v1159
        %1361 = vmatpush.bf16.msra.mxu0 %v1157
        %1362 = vmatpush.bf16.msra.mxu0 %v1155
        %1363 = vmatpush.bf16.msra.mxu0 %v1153
        %1364 = vmatmul.bf16.gmra.mxu0 %v882
        %v1365 = vpop.f32.mrf.mxu0
        %v1366 = vadd.f32 %v957, %v1365
        %v1367 = vpop.f32.mrf.mxu0
        %v1368 = vadd.f32 %v957, %v1367
        %1369 = vmatmul.bf16.gmra.mxu0 %v886
        %v1370 = vpop.f32.mrf.mxu0
        %v1371 = vadd.f32 %v957, %v1370
        %v1372 = vpop.f32.mrf.mxu0
        %v1373 = vadd.f32 %v957, %v1372
        %1374 = vdwg.mxu0
        %1375 = vmatpush.bf16.msra.mxu0 %v1183
        %1376 = vmatpush.bf16.msra.mxu0 %v1181
        %1377 = vmatpush.bf16.msra.mxu0 %v1179
        %1378 = vmatpush.bf16.msra.mxu0 %v1177
        %1379 = vmatpush.bf16.msra.mxu0 %v1175
        %1380 = vmatpush.bf16.msra.mxu0 %v1173
        %1381 = vmatpush.bf16.msra.mxu0 %v1171
        %1382 = vmatpush.bf16.msra.mxu0 %v1169
        %1383 = vmatmul.bf16.gmra.mxu0 %v883
        %v1384 = vpop.f32.mrf.mxu0
        %v1385 = vadd.f32 %v1366, %v1384
        %v1386 = vpop.f32.mrf.mxu0
        %v1387 = vadd.f32 %v1368, %v1386
        %1388 = vmatmul.bf16.gmra.mxu0 %v887
        %v1389 = vpop.f32.mrf.mxu0
        %v1390 = vadd.f32 %v1371, %v1389
        %v1391 = vpop.f32.mrf.mxu0
        %v1392 = vadd.f32 %v1373, %v1391
        %1393 = vdwg.mxu0
        %1394 = vmatpush.bf16.msra.mxu0 %v1199
        %1395 = vmatpush.bf16.msra.mxu0 %v1197
        %1396 = vmatpush.bf16.msra.mxu0 %v1195
        %1397 = vmatpush.bf16.msra.mxu0 %v1193
        %1398 = vmatpush.bf16.msra.mxu0 %v1191
        %1399 = vmatpush.bf16.msra.mxu0 %v1189
        %1400 = vmatpush.bf16.msra.mxu0 %v1187
        %1401 = vmatpush.bf16.msra.mxu0 %v1185
        %1402 = vmatmul.bf16.gmra.mxu0 %v884
        %v1403 = vpop.f32.mrf.mxu0
        %v1404 = vadd.f32 %v1385, %v1403
        %v1405 = vpop.f32.mrf.mxu0
        %v1406 = vadd.f32 %v1387, %v1405
        %1407 = vmatmul.bf16.gmra.mxu0 %v888
        %v1408 = vpop.f32.mrf.mxu0
        %v1409 = vadd.f32 %v1390, %v1408
        %v1410 = vpop.f32.mrf.mxu0
        %v1411 = vadd.f32 %v1392, %v1410
        %1412 = vdwg.mxu0
        %1413 = vmatpush.bf16.msra.mxu0 %v1215
        %1414 = vmatpush.bf16.msra.mxu0 %v1213
        %1415 = vmatpush.bf16.msra.mxu0 %v1211
        %1416 = vmatpush.bf16.msra.mxu0 %v1209
        %1417 = vmatpush.bf16.msra.mxu0 %v1207
        %1418 = vmatpush.bf16.msra.mxu0 %v1205
        %1419 = vmatpush.bf16.msra.mxu0 %v1203
        %1420 = vmatpush.bf16.msra.mxu0 %v1201
        %1421 = vmatmul.bf16.gmra.mxu0 %v885
        %v1422 = vpop.f32.mrf.mxu0
        %v1423 = vadd.f32 %v1404, %v1422
        %v1424 = vpop.f32.mrf.mxu0
        %v1425 = vadd.f32 %v1406, %v1424
        %1426 = vmatmul.bf16.gmra.mxu0 %v889
        %v1427 = vpop.f32.mrf.mxu0
        %v1428 = vadd.f32 %v1409, %v1427
        %v1429 = vpop.f32.mrf.mxu0
        %v1430 = vadd.f32 %v1411, %v1429
        %1431 = vdwg.mxu0
        %1432 = vst [vmem:[%s293] sm:$0xff] %v1347
        %1433 = vst [vmem:[%s293 + $0x8] sm:$0xff] %v1423
        %1434 = vst [vmem:[%s293 + $0x10] sm:$0xff] %v1349
        %1435 = vst [vmem:[%s293 + $0x18] sm:$0xff] %v1425
        %1436 = vst [vmem:[%s293 + $0x20] sm:$0xff] %v1352
        %1437 = vst [vmem:[%s293 + $0x28] sm:$0xff] %v1428
        %1438 = vst [vmem:[%s293 + $0x30] sm:$0xff] %v1354
        %1439 = vst [vmem:[%s293 + $0x38] sm:$0xff] %v1430
        %s1440 = sand.u32 %s142, 1
        %s1441 = scalar_lea.sflag [#allocation4], %s1440
        %s1442 = sand.u32 %s142, 1
        %s1443 = smul.addr %s1442, 64
        %s1444 = scalar_lea.vmem [#allocation10], %s1443
        // Predicated region
        $region57: #{tpu_custom_call.1} parent=39 // pred_check
          %p1445 = pneg %p152
        $region58: #{tpu_custom_call.1} parent=39 // pred_check_branch
          %1447 = sbr.rel (%p1445) target = $region60
        $region59: #{tpu_custom_call.1} parent=39 // pred_region
          %s1448 = smul.u32 4, %s24
          %1450 = vsyncadd %s1441, 0
          %s1451 = smul.addr %s1448, 2
          %s1452 = smul.addr %s1451, 8
          %s1453 = scalar_lea.hbm %s5, %s1452
          %s1454 = sshll.u32 %s1444, 4
          %s1455 = int_to_ptr.vmem [resolvable:$true] %s1454
          %s1456 = sshll.u32 %s1453, 4
          %s1457 = int_to_ptr.hbm [resolvable:$true] %s1456
          %1462 = dma.vmem_to_hbm [thread:$0]  %s1455, 1024, %s1457, %s1441, 256, 256, 16
        $region60: #{tpu_custom_call.1} parent=39 // pred_fallthru
          _
      $region40: #{tpu_custom_call.1} parent=5 // pred_fallthru
        _
      %p1463 = scmp.le.s32.totalorder 2, %s19
      // Predicated region
      $region61: #{tpu_custom_call.1} parent=5 // pred_check
        %p1464 = pneg %p1463
      $region62: #{tpu_custom_call.1} parent=5 // pred_check_branch
        %1466 = sbr.rel (%p1464) target = $region64
      $region63: #{tpu_custom_call.1} parent=5 // pred_region
        %s1467 = ssub.s32 %s19, 2
        // Predicated region
        $region65: #{tpu_custom_call.1} parent=63 // pred_check
          %p1468 = pneg %p158
        $region66: #{tpu_custom_call.1} parent=63 // pred_check_branch
          %1470 = sbr.rel (%p1468) target = $region68
        $region67: #{tpu_custom_call.1} parent=63 // pred_region
          %s1471 = sand.u32 %s143, 1
          %s1472 = scalar_lea.sflag [#allocation4], %s1471
          %s1473 = sand.u32 %s143, 1
          %s1474 = smul.addr %s1473, 64
          %s1475 = scalar_lea.vmem [#allocation10], %s1474
          %1477 = dma.done %s1472, 1024
        $region68: #{tpu_custom_call.1} parent=63 // pred_fallthru
          _
      $region64: #{tpu_custom_call.1} parent=5 // pred_fallthru
        _
    $region6: #{tpu_custom_call.1} parent=1 // loop_footer
      %s23 = sadd.s32 1, %s19
    $region7: #{tpu_custom_call.1} parent=1 // loop_footer_branch
      %18 = sbr.rel target = $region3
    $region8: #{tpu_custom_call.1} parent=1 // loop_exit
      _
    %1478 = vsyncpa [#allocation3], 1
    %s1479 = scalar_lea.sflag [#allocation3], 1
    %1480 = vsyncpa %s1479, 1
    %1481 = vsyncpa [#allocation6], 1
    %1482 = vsyncpa [#allocation9], 1
    %1483 = vsyncpa [#allocation4], 1
    %s1484 = scalar_lea.sflag [#allocation4], 1
    %1485 = vsyncpa %s1484, 1

</llo_original>
